<compile_context>
chip_gen: v7x
topology: tpu7x:2x2x1
jax: 0.10.0
libtpu: 0.0.40
codegen_flags: <defaults>
</compile_context>

<pallas_src>
import math

import jax
import jax.numpy as jnp
from jax.experimental import pallas as pl
from jax.experimental.pallas import tpu as pltpu

FEATURE_SIZE = 768
_MAX_BATCH_TILE = 512


def _fused_ensemble_kernel(x_ref, w_ref, b_ref, o_ref):
    # x_ref: (TB, 768)   -- one batch tile
    # w_ref: (768, M*C)  -- fused ensemble weight slab (resident across tiles)
    # b_ref: (1,   M*C)  -- fused ensemble biases
    # o_ref: (TB,  M*C)  -- fused output tile (batch-major, lane-packed)
    y = jnp.dot(x_ref[...], w_ref[...], preferred_element_type=jnp.float32)
    o_ref[...] = (y + b_ref[...]).astype(o_ref.dtype)


def pack_params(weights, biases):
    """One-time layout: (M,768,C)/(M,C) -> contiguous (768, M*C)/(1, M*C)."""
    M, F, C = weights.shape
    w_packed = jnp.transpose(weights, (1, 0, 2)).reshape(F, M * C)
    b_packed = biases.reshape(1, M * C)
    return w_packed, b_packed


def _pick_batch_tile(batch):
    if batch <= _MAX_BATCH_TILE:
        return batch
    for tb in (512, 256, 128, 64, 32, 16, 8):
        if batch % tb == 0:
            return tb
    return batch  # odd batch sizes: single whole-batch tile


def bin_ensemble_forward(x, w_packed, b_packed, num_models, num_classes):
    """Pallas equivalent of BinEnsembleTorch.forward.

    Args:
      x:        (batch, 768) float32
      w_packed: (768, num_models * num_classes) float32  (from pack_params)
      b_packed: (1,   num_models * num_classes) float32  (from pack_params)
    Returns:
      (batch, num_models, num_classes) float32
    """
    assert x.ndim == 2, "Input must be (batch, feature_size)"
    B, F = x.shape
    assert F == FEATURE_SIZE
    N = num_models * num_classes
    assert w_packed.shape == (F, N)
    assert b_packed.shape == (1, N)

    TB = _pick_batch_tile(B)
    grid = (pl.cdiv(B, TB),)

    cost = pl.CostEstimate(
        flops=2 * B * F * N,
        transcendentals=0,
        bytes_accessed=4 * (B * F + F * N + N + B * N),
    )

    out_flat = pl.pallas_call(
        _fused_ensemble_kernel,
        out_shape=jax.ShapeDtypeStruct((B, N), jnp.float32),
        grid_spec=pltpu.PrefetchScalarGridSpec(
            num_scalar_prefetch=0,
            grid=grid,
            in_specs=[
                pl.BlockSpec((TB, F), lambda i: (i, 0)),  # batch tile of x
                pl.BlockSpec((F, N), lambda i: (0, 0)),   # fused weights (resident)
                pl.BlockSpec((1, N), lambda i: (0, 0)),   # fused biases (resident)
            ],
            out_specs=pl.BlockSpec((TB, N), lambda i: (i, 0)),
        ),
        compiler_params=pltpu.CompilerParams(
            dimension_semantics=("parallel",),
        ),
        cost_estimate=cost,
    )(x, w_packed, b_packed)

    # Free reshape: (B, M*C) -> (B, M, C) matches torch.stack(outputs, dim=1).
    return out_flat.reshape(B, num_models, num_classes)


def init_params(key, num_models, num_classes):
    """Deterministic init mimicking nn.Linear defaults: U(-1/sqrt(in), 1/sqrt(in))."""
    bound = 1.0 / math.sqrt(FEATURE_SIZE)
    kw, kb = jax.random.split(key)
    # (num_models, 768, num_classes): (in, out) layout per model.
    weights = jax.random.uniform(
        kw, (num_models, FEATURE_SIZE, num_classes),
        minval=-bound, maxval=bound, dtype=jnp.float32)
    biases = jax.random.uniform(
        kb, (num_models, num_classes),
        minval=-bound, maxval=bound, dtype=jnp.float32)
    return weights, biases


if __name__ == "__main__":
    batch = 8
    num_models = 4
    num_classes = 5

    key = jax.random.PRNGKey(0)
    kx, kp = jax.random.split(key)

    x = jax.random.normal(kx, (batch, FEATURE_SIZE), dtype=jnp.float32)
    weights, biases = init_params(kp, num_models, num_classes)

    # One-time HBM pre-layout of the ensemble params (done outside the forward).
    w_packed, b_packed = pack_params(weights, biases)

    out = bin_ensemble_forward(x, w_packed, b_packed, num_models, num_classes)
    out = jax.block_until_ready(out)

    # Reference check in plain JAX (same math as the PyTorch module).
    ref = jnp.einsum("bf,mfc->bmc", x, weights) + biases[None, :, :]
    assert out.shape == (batch, num_models, num_classes), out.shape
    assert jnp.allclose(out, ref, atol=1e-4, rtol=1e-4), float(jnp.max(jnp.abs(out - ref)))

    print("KERNEL_OK")
</pallas_src>

<mosaic_0001>
module attributes {stable_mosaic.version = 11 : i64} {
  func.func @_fused_ensemble_kernel(%arg0: i32, %arg1: memref<8x768xf32, #tpu.memory_space<vmem>>, %arg2: memref<768x20xf32, #tpu.memory_space<vmem>>, %arg3: memref<1x20xf32, #tpu.memory_space<vmem>>, %arg4: memref<8x20xf32, #tpu.memory_space<vmem>>) attributes {dimension_semantics = [#tpu.dimension_semantics<parallel>], iteration_bounds = array<i64: 1>, scalar_prefetch = 0 : i64, scratch_operands = 0 : i64, tpu.core_type = #tpu.core_type<tc>, window_params = [{transform_indices = @transform_0, window_bounds = array<i64: 8, 768>}, {pipeline_mode = #tpu.pipeline_mode<synchronous>, transform_indices = @transform_1, window_bounds = array<i64: 768, 20>}, {pipeline_mode = #tpu.pipeline_mode<synchronous>, transform_indices = @transform_2, window_bounds = array<i64: 1, 20>}, {transform_indices = @transform_3, window_bounds = array<i64: 8, 20>}]} {
    %c0 = arith.constant 0 : index
    %c0_0 = arith.constant 0 : index
    %0 = vector.load %arg1[%c0, %c0_0] : memref<8x768xf32, #tpu.memory_space<vmem>>, vector<8x768xf32>
    %c0_1 = arith.constant 0 : index
    %c0_2 = arith.constant 0 : index
    %1 = vector.load %arg2[%c0_1, %c0_2] : memref<768x20xf32, #tpu.memory_space<vmem>>, vector<768x20xf32>
    %cst = arith.constant dense<0.000000e+00> : vector<8x20xf32>
    %2 = tpu.matmul %0, %1, %cst {dimension_numbers = #tpu.dot_dimension_numbers<[1], [0], [0], [1], [0, 0, 1, 1], [], []>} : vector<8x768xf32>, vector<768x20xf32>, vector<8x20xf32> -> vector<8x20xf32>
    %c0_3 = arith.constant 0 : index
    %c0_4 = arith.constant 0 : index
    %3 = vector.load %arg3[%c0_3, %c0_4] : memref<1x20xf32, #tpu.memory_space<vmem>>, vector<1x20xf32>
    %4 = vector.broadcast %3 : vector<1x20xf32> to vector<8x20xf32>
    %5 = arith.addf %2, %4 : vector<8x20xf32>
    %c0_5 = arith.constant 0 : index
    %c0_6 = arith.constant 0 : index
    %6 = vector.load %arg4[%c0_5, %c0_6] : memref<8x20xf32, #tpu.memory_space<vmem>>, vector<8x20xf32>
    tpu.vector_store %arg4[%c0_5, %c0_6], %5 {strides = array<i32>} : memref<8x20xf32, #tpu.memory_space<vmem>>, vector<8x20xf32>,
    return
  }
  func.func @transform_0(%arg0: i32) -> (i32, i32) {
    %c0_i32 = arith.constant 0 : i32
    %c0_i32_0 = arith.constant 0 : i32
    return %arg0, %c0_i32 : i32, i32
  }
  func.func @transform_1(%arg0: i32) -> (i32, i32) {
    %c0_i32 = arith.constant 0 : i32
    %c0_i32_0 = arith.constant 0 : i32
    %c0_i32_1 = arith.constant 0 : i32
    return %c0_i32, %c0_i32_0 : i32, i32
  }
  func.func @transform_2(%arg0: i32) -> (i32, i32) {
    %c0_i32 = arith.constant 0 : i32
    %c0_i32_0 = arith.constant 0 : i32
    %c0_i32_1 = arith.constant 0 : i32
    return %c0_i32, %c0_i32_0 : i32, i32
  }
  func.func @transform_3(%arg0: i32) -> (i32, i32) {
    %c0_i32 = arith.constant 0 : i32
    %c0_i32_0 = arith.constant 0 : i32
    return %arg0, %c0_i32 : i32, i32
  }
}

</mosaic_0001>

<llo_original>
// kernel: tpu_custom_call.1
$region0: #{tpu_custom_call.1}
  #allocation0 [shape = 'u32[]', space=smem, size = 0x4, offset = 0x4, fixed_abs, tag = 'smem constant byte address 0x4 - core index']
  #allocation1 [shape = 'u32[144,128]{1,0:T(1,128)}', space=vmem, size = 0x12000, scoped, tag = 'internal scratch']
  %s0 = inlined_call_operand.vmem [shape: f32[8,768], index: 0, kind: input, shape index: {}]
  %s1 = inlined_call_operand.vmem [shape: f32[768,20], index: 1, kind: input, shape index: {}]
  %s2 = inlined_call_operand.vmem [shape: f32[1,20], index: 2, kind: input, shape index: {}]
  %s3 = inlined_call_operand.hbm [shape: f32[8,20], index: 3, kind: output, shape index: {}]
  %s4 = sld [smem:[#allocation0]]
  $region22: #{tpu_custom_call.1} parent=0
    _
  %s6 = ssub.s32 1, %s4
  %s7 = scalar_select 0, %s6, %s4
  $region1: #{tpu_custom_call.1} parent=0
    #allocation2 [shape = 'u8[4096]{0}', space=vmem, size = 0x1000, scoped, tag = 'output window, operand 0, single buffered']
    #allocation3 [shape = 's32[1]{0}', space=sflag, size = 0x4, scoped, tag = 'scoped memory for tpu_custom_call.1']
    %8 = vsyncpa [#allocation3], 0
    // Predicated region
    $region2: #{tpu_custom_call.1} parent=1 // pred_check
      _
    $region3: #{tpu_custom_call.1} parent=1 // pred_check_branch
      %10 = sbr.rel (0) target = $region5
    $region4: #{tpu_custom_call.1} parent=1 // pred_region
      _
    $region5: #{tpu_custom_call.1} parent=1 // pred_fallthru
      _
    // Predicated region
    $region6: #{tpu_custom_call.1} parent=1 // pred_check
      _
    $region7: #{tpu_custom_call.1} parent=1 // pred_check_branch
      %12 = sbr.rel (0) target = $region9
    $region8: #{tpu_custom_call.1} parent=1 // pred_region
      _
    $region9: #{tpu_custom_call.1} parent=1 // pred_fallthru
      _
    // Predicated region
    $region10: #{tpu_custom_call.1} parent=1 // pred_check
      _
    $region11: #{tpu_custom_call.1} parent=1 // pred_check_branch
      %14 = sbr.rel (0) target = $region13
    $region12: #{tpu_custom_call.1} parent=1 // pred_region
      _
    $region13: #{tpu_custom_call.1} parent=1 // pred_fallthru
      _
    %v15 = vld [vmem:[%s0] sm:$0xff]
    %v16 = vld [vmem:[%s0 + $0x8] sm:$0xff]
    %v17 = vld [vmem:[%s0 + $0x10] sm:$0xff]
    %v18 = vld [vmem:[%s0 + $0x18] sm:$0xff]
    %v19 = vld [vmem:[%s0 + $0x20] sm:$0xff]
    %v20 = vld [vmem:[%s0 + $0x28] sm:$0xff]
    %v21 = vld [vmem:[%s1] sm:$0xff]
    %v22 = vld [vmem:[%s1 + $0x8] sm:$0xff]
    %v23 = vld [vmem:[%s1 + $0x10] sm:$0xff]
    %v24 = vld [vmem:[%s1 + $0x18] sm:$0xff]
    %v25 = vld [vmem:[%s1 + $0x20] sm:$0xff]
    %v26 = vld [vmem:[%s1 + $0x28] sm:$0xff]
    %v27 = vld [vmem:[%s1 + $0x30] sm:$0xff]
    %v28 = vld [vmem:[%s1 + $0x38] sm:$0xff]
    %v29 = vld [vmem:[%s1 + $0x40] sm:$0xff]
    %v30 = vld [vmem:[%s1 + $0x48] sm:$0xff]
    %v31 = vld [vmem:[%s1 + $0x50] sm:$0xff]
    %v32 = vld [vmem:[%s1 + $0x58] sm:$0xff]
    %v33 = vld [vmem:[%s1 + $0x60] sm:$0xff]
    %v34 = vld [vmem:[%s1 + $0x68] sm:$0xff]
    %v35 = vld [vmem:[%s1 + $0x70] sm:$0xff]
    %v36 = vld [vmem:[%s1 + $0x78] sm:$0xff]
    %v37 = vld [vmem:[%s1 + $0x80] sm:$0xff]
    %v38 = vld [vmem:[%s1 + $0x88] sm:$0xff]
    %v39 = vld [vmem:[%s1 + $0x90] sm:$0xff]
    %v40 = vld [vmem:[%s1 + $0x98] sm:$0xff]
    %v41 = vld [vmem:[%s1 + $0xa0] sm:$0xff]
    %v42 = vld [vmem:[%s1 + $0xa8] sm:$0xff]
    %v43 = vld [vmem:[%s1 + $0xb0] sm:$0xff]
    %v44 = vld [vmem:[%s1 + $0xb8] sm:$0xff]
    %v45 = vld [vmem:[%s1 + $0xc0] sm:$0xff]
    %v46 = vld [vmem:[%s1 + $0xc8] sm:$0xff]
    %v47 = vld [vmem:[%s1 + $0xd0] sm:$0xff]
    %v48 = vld [vmem:[%s1 + $0xd8] sm:$0xff]
    %v49 = vld [vmem:[%s1 + $0xe0] sm:$0xff]
    %v50 = vld [vmem:[%s1 + $0xe8] sm:$0xff]
    %v51 = vld [vmem:[%s1 + $0xf0] sm:$0xff]
    %v52 = vld [vmem:[%s1 + $0xf8] sm:$0xff]
    %v53 = vld [vmem:[%s1 + $0x100] sm:$0xff]
    %v54 = vld [vmem:[%s1 + $0x108] sm:$0xff]
    %v55 = vld [vmem:[%s1 + $0x110] sm:$0xff]
    %v56 = vld [vmem:[%s1 + $0x118] sm:$0xff]
    %v57 = vld [vmem:[%s1 + $0x120] sm:$0xff]
    %v58 = vld [vmem:[%s1 + $0x128] sm:$0xff]
    %v59 = vld [vmem:[%s1 + $0x130] sm:$0xff]
    %v60 = vld [vmem:[%s1 + $0x138] sm:$0xff]
    %v61 = vld [vmem:[%s1 + $0x140] sm:$0xff]
    %v62 = vld [vmem:[%s1 + $0x148] sm:$0xff]
    %v63 = vld [vmem:[%s1 + $0x150] sm:$0xff]
    %v64 = vld [vmem:[%s1 + $0x158] sm:$0xff]
    %v65 = vld [vmem:[%s1 + $0x160] sm:$0xff]
    %v66 = vld [vmem:[%s1 + $0x168] sm:$0xff]
    %v67 = vld [vmem:[%s1 + $0x170] sm:$0xff]
    %v68 = vld [vmem:[%s1 + $0x178] sm:$0xff]
    %v69 = vld [vmem:[%s1 + $0x180] sm:$0xff]
    %v70 = vld [vmem:[%s1 + $0x188] sm:$0xff]
    %v71 = vld [vmem:[%s1 + $0x190] sm:$0xff]
    %v72 = vld [vmem:[%s1 + $0x198] sm:$0xff]
    %v73 = vld [vmem:[%s1 + $0x1a0] sm:$0xff]
    %v74 = vld [vmem:[%s1 + $0x1a8] sm:$0xff]
    %v75 = vld [vmem:[%s1 + $0x1b0] sm:$0xff]
    %v76 = vld [vmem:[%s1 + $0x1b8] sm:$0xff]
    %v77 = vld [vmem:[%s1 + $0x1c0] sm:$0xff]
    %v78 = vld [vmem:[%s1 + $0x1c8] sm:$0xff]
    %v79 = vld [vmem:[%s1 + $0x1d0] sm:$0xff]
    %v80 = vld [vmem:[%s1 + $0x1d8] sm:$0xff]
    %v81 = vld [vmem:[%s1 + $0x1e0] sm:$0xff]
    %v82 = vld [vmem:[%s1 + $0x1e8] sm:$0xff]
    %v83 = vld [vmem:[%s1 + $0x1f0] sm:$0xff]
    %v84 = vld [vmem:[%s1 + $0x1f8] sm:$0xff]
    %v85 = vld [vmem:[%s1 + $0x200] sm:$0xff]
    %v86 = vld [vmem:[%s1 + $0x208] sm:$0xff]
    %v87 = vld [vmem:[%s1 + $0x210] sm:$0xff]
    %v88 = vld [vmem:[%s1 + $0x218] sm:$0xff]
    %v89 = vld [vmem:[%s1 + $0x220] sm:$0xff]
    %v90 = vld [vmem:[%s1 + $0x228] sm:$0xff]
    %v91 = vld [vmem:[%s1 + $0x230] sm:$0xff]
    %v92 = vld [vmem:[%s1 + $0x238] sm:$0xff]
    %v93 = vld [vmem:[%s1 + $0x240] sm:$0xff]
    %v94 = vld [vmem:[%s1 + $0x248] sm:$0xff]
    %v95 = vld [vmem:[%s1 + $0x250] sm:$0xff]
    %v96 = vld [vmem:[%s1 + $0x258] sm:$0xff]
    %v97 = vld [vmem:[%s1 + $0x260] sm:$0xff]
    %v98 = vld [vmem:[%s1 + $0x268] sm:$0xff]
    %v99 = vld [vmem:[%s1 + $0x270] sm:$0xff]
    %v100 = vld [vmem:[%s1 + $0x278] sm:$0xff]
    %v101 = vld [vmem:[%s1 + $0x280] sm:$0xff]
    %v102 = vld [vmem:[%s1 + $0x288] sm:$0xff]
    %v103 = vld [vmem:[%s1 + $0x290] sm:$0xff]
    %v104 = vld [vmem:[%s1 + $0x298] sm:$0xff]
    %v105 = vld [vmem:[%s1 + $0x2a0] sm:$0xff]
    %v106 = vld [vmem:[%s1 + $0x2a8] sm:$0xff]
    %v107 = vld [vmem:[%s1 + $0x2b0] sm:$0xff]
    %v108 = vld [vmem:[%s1 + $0x2b8] sm:$0xff]
    %v109 = vld [vmem:[%s1 + $0x2c0] sm:$0xff]
    %v110 = vld [vmem:[%s1 + $0x2c8] sm:$0xff]
    %v111 = vld [vmem:[%s1 + $0x2d0] sm:$0xff]
    %v112 = vld [vmem:[%s1 + $0x2d8] sm:$0xff]
    %v113 = vld [vmem:[%s1 + $0x2e0] sm:$0xff]
    %v114 = vld [vmem:[%s1 + $0x2e8] sm:$0xff]
    %v115 = vld [vmem:[%s1 + $0x2f0] sm:$0xff]
    %v116 = vld [vmem:[%s1 + $0x2f8] sm:$0xff]
    %v117 = vld [vmem:[%s2] sm:$0x1]
    %v119 = vlaneseq
    %v120 = vshrl.u32 %v119, 7
    %v121 = vsub.s32 0, %v120
    %v122 = vrot.slane %v117, %v121
    %124 = vmatprep.subr.mxu0 0.0
    %125 = vmatpush1.msra.mxu0 %v21
    %126 = vmatprep.subr.mxu0 0.0
    %127 = vmatpush1.msra.mxu0 %v22
    %128 = vmatprep.subr.mxu0 0.0
    %129 = vmatpush1.msra.mxu0 %v23
    %130 = vmatprep.subr.mxu0 0.0
    %131 = vmatpush1.msra.mxu0 %v24
    %132 = vmatprep.subr.mxu0 0.0
    %133 = vmatpush1.msra.mxu0 %v25
    %134 = vmatprep.subr.mxu0 0.0
    %135 = vmatpush1.msra.mxu0 %v26
    %136 = vmatprep.subr.mxu0 0.0
    %137 = vmatpush1.msra.mxu0 %v27
    %138 = vmatprep.subr.mxu0 0.0
    %139 = vmatpush1.msra.mxu0 %v28
    %140 = vmatprep.subr.mxu0 0.0
    %141 = vmatpush1.msra.mxu0 %v29
    %142 = vmatprep.subr.mxu0 0.0
    %143 = vmatpush1.msra.mxu0 %v30
    %144 = vmatprep.subr.mxu0 0.0
    %145 = vmatpush1.msra.mxu0 %v31
    %146 = vmatprep.subr.mxu0 0.0
    %147 = vmatpush1.msra.mxu0 %v32
    %148 = vmatprep.subr.mxu0 0.0
    %149 = vmatpush1.msra.mxu0 %v33
    %150 = vmatprep.subr.mxu0 0.0
    %151 = vmatpush1.msra.mxu0 %v34
    %152 = vmatprep.subr.mxu0 0.0
    %153 = vmatpush1.msra.mxu0 %v35
    %154 = vmatprep.subr.mxu0 0.0
    %155 = vmatpush1.msra.mxu0 %v36
    %156 = vmatprep.subr.mxu0 0.0
    %157 = vmatpush1.msra.mxu0 %v37
    %158 = vmatprep.subr.mxu0 0.0
    %159 = vmatpush1.msra.mxu0 %v38
    %160 = vmatprep.subr.mxu0 0.0
    %161 = vmatpush1.msra.mxu0 %v39
    %162 = vmatprep.subr.mxu0 0.0
    %163 = vmatpush1.msra.mxu0 %v40
    %164 = vmatprep.subr.mxu0 0.0
    %165 = vmatpush1.msra.mxu0 %v41
    %166 = vmatprep.subr.mxu0 0.0
    %167 = vmatpush1.msra.mxu0 %v42
    %168 = vmatprep.subr.mxu0 0.0
    %169 = vmatpush1.msra.mxu0 %v43
    %170 = vmatprep.subr.mxu0 0.0
    %171 = vmatpush1.msra.mxu0 %v44
    %172 = vmatprep.subr.mxu0 0.0
    %173 = vmatpush1.msra.mxu0 %v45
    %174 = vmatprep.subr.mxu0 0.0
    %175 = vmatpush1.msra.mxu0 %v46
    %176 = vmatprep.subr.mxu0 0.0
    %177 = vmatpush1.msra.mxu0 %v47
    %178 = vmatprep.subr.mxu0 0.0
    %179 = vmatpush1.msra.mxu0 %v48
    %180 = vmatprep.subr.mxu0 0.0
    %181 = vmatpush1.msra.mxu0 %v49
    %182 = vmatprep.subr.mxu0 0.0
    %183 = vmatpush1.msra.mxu0 %v50
    %184 = vmatprep.subr.mxu0 0.0
    %185 = vmatpush1.msra.mxu0 %v51
    %186 = vmatprep.subr.mxu0 0.0
    %187 = vmatpush1.msra.mxu0 %v52
    %188 = vmatprep.mubr.f32.mxu0 %v16
    %189 = vmatmul.mubr.f32.gmra.mrb[0].mxu0 %v15
    %v190 = vpop.f32.mrb[0].mxu0
    %v191 = vadd.f32 %v122, %v190
    %v192 = vpop.f32.mrb[0].mxu0
    %193 = vdwg.mxu0
    %194 = vmatprep.subr.mxu0 0.0
    %195 = vmatpush1.msra.mxu0 %v53
    %196 = vmatprep.subr.mxu0 0.0
    %197 = vmatpush1.msra.mxu0 %v54
    %198 = vmatprep.subr.mxu0 0.0
    %199 = vmatpush1.msra.mxu0 %v55
    %200 = vmatprep.subr.mxu0 0.0
    %201 = vmatpush1.msra.mxu0 %v56
    %202 = vmatprep.subr.mxu0 0.0
    %203 = vmatpush1.msra.mxu0 %v57
    %204 = vmatprep.subr.mxu0 0.0
    %205 = vmatpush1.msra.mxu0 %v58
    %206 = vmatprep.subr.mxu0 0.0
    %207 = vmatpush1.msra.mxu0 %v59
    %208 = vmatprep.subr.mxu0 0.0
    %209 = vmatpush1.msra.mxu0 %v60
    %210 = vmatprep.subr.mxu0 0.0
    %211 = vmatpush1.msra.mxu0 %v61
    %212 = vmatprep.subr.mxu0 0.0
    %213 = vmatpush1.msra.mxu0 %v62
    %214 = vmatprep.subr.mxu0 0.0
    %215 = vmatpush1.msra.mxu0 %v63
    %216 = vmatprep.subr.mxu0 0.0
    %217 = vmatpush1.msra.mxu0 %v64
    %218 = vmatprep.subr.mxu0 0.0
    %219 = vmatpush1.msra.mxu0 %v65
    %220 = vmatprep.subr.mxu0 0.0
    %221 = vmatpush1.msra.mxu0 %v66
    %222 = vmatprep.subr.mxu0 0.0
    %223 = vmatpush1.msra.mxu0 %v67
    %224 = vmatprep.subr.mxu0 0.0
    %225 = vmatpush1.msra.mxu0 %v68
    %226 = vmatprep.subr.mxu0 0.0
    %227 = vmatpush1.msra.mxu0 %v69
    %228 = vmatprep.subr.mxu0 0.0
    %229 = vmatpush1.msra.mxu0 %v70
    %230 = vmatprep.subr.mxu0 0.0
    %231 = vmatpush1.msra.mxu0 %v71
    %232 = vmatprep.subr.mxu0 0.0
    %233 = vmatpush1.msra.mxu0 %v72
    %234 = vmatprep.subr.mxu0 0.0
    %235 = vmatpush1.msra.mxu0 %v73
    %236 = vmatprep.subr.mxu0 0.0
    %237 = vmatpush1.msra.mxu0 %v74
    %238 = vmatprep.subr.mxu0 0.0
    %239 = vmatpush1.msra.mxu0 %v75
    %240 = vmatprep.subr.mxu0 0.0
    %241 = vmatpush1.msra.mxu0 %v76
    %242 = vmatprep.subr.mxu0 0.0
    %243 = vmatpush1.msra.mxu0 %v77
    %244 = vmatprep.subr.mxu0 0.0
    %245 = vmatpush1.msra.mxu0 %v78
    %246 = vmatprep.subr.mxu0 0.0
    %247 = vmatpush1.msra.mxu0 %v79
    %248 = vmatprep.subr.mxu0 0.0
    %249 = vmatpush1.msra.mxu0 %v80
    %250 = vmatprep.subr.mxu0 0.0
    %251 = vmatpush1.msra.mxu0 %v81
    %252 = vmatprep.subr.mxu0 0.0
    %253 = vmatpush1.msra.mxu0 %v82
    %254 = vmatprep.subr.mxu0 0.0
    %255 = vmatpush1.msra.mxu0 %v83
    %256 = vmatprep.subr.mxu0 0.0
    %257 = vmatpush1.msra.mxu0 %v84
    %258 = vmatprep.mubr.f32.mxu0 %v18
    %259 = vmatmul.mubr.f32.gmra.mrb[0].mxu0 %v17
    %v260 = vpop.f32.mrb[0].mxu0
    %v261 = vadd.f32 %v191, %v260
    %v262 = vpop.f32.mrb[0].mxu0
    %263 = vdwg.mxu0
    %264 = vmatprep.subr.mxu0 0.0
    %265 = vmatpush1.msra.mxu0 %v85
    %266 = vmatprep.subr.mxu0 0.0
    %267 = vmatpush1.msra.mxu0 %v86
    %268 = vmatprep.subr.mxu0 0.0
    %269 = vmatpush1.msra.mxu0 %v87
    %270 = vmatprep.subr.mxu0 0.0
    %271 = vmatpush1.msra.mxu0 %v88
    %272 = vmatprep.subr.mxu0 0.0
    %273 = vmatpush1.msra.mxu0 %v89
    %274 = vmatprep.subr.mxu0 0.0
    %275 = vmatpush1.msra.mxu0 %v90
    %276 = vmatprep.subr.mxu0 0.0
    %277 = vmatpush1.msra.mxu0 %v91
    %278 = vmatprep.subr.mxu0 0.0
    %279 = vmatpush1.msra.mxu0 %v92
    %280 = vmatprep.subr.mxu0 0.0
    %281 = vmatpush1.msra.mxu0 %v93
    %282 = vmatprep.subr.mxu0 0.0
    %283 = vmatpush1.msra.mxu0 %v94
    %284 = vmatprep.subr.mxu0 0.0
    %285 = vmatpush1.msra.mxu0 %v95
    %286 = vmatprep.subr.mxu0 0.0
    %287 = vmatpush1.msra.mxu0 %v96
    %288 = vmatprep.subr.mxu0 0.0
    %289 = vmatpush1.msra.mxu0 %v97
    %290 = vmatprep.subr.mxu0 0.0
    %291 = vmatpush1.msra.mxu0 %v98
    %292 = vmatprep.subr.mxu0 0.0
    %293 = vmatpush1.msra.mxu0 %v99
    %294 = vmatprep.subr.mxu0 0.0
    %295 = vmatpush1.msra.mxu0 %v100
    %296 = vmatprep.subr.mxu0 0.0
    %297 = vmatpush1.msra.mxu0 %v101
    %298 = vmatprep.subr.mxu0 0.0
    %299 = vmatpush1.msra.mxu0 %v102
    %300 = vmatprep.subr.mxu0 0.0
    %301 = vmatpush1.msra.mxu0 %v103
    %302 = vmatprep.subr.mxu0 0.0
    %303 = vmatpush1.msra.mxu0 %v104
    %304 = vmatprep.subr.mxu0 0.0
    %305 = vmatpush1.msra.mxu0 %v105
    %306 = vmatprep.subr.mxu0 0.0
    %307 = vmatpush1.msra.mxu0 %v106
    %308 = vmatprep.subr.mxu0 0.0
    %309 = vmatpush1.msra.mxu0 %v107
    %310 = vmatprep.subr.mxu0 0.0
    %311 = vmatpush1.msra.mxu0 %v108
    %312 = vmatprep.subr.mxu0 0.0
    %313 = vmatpush1.msra.mxu0 %v109
    %314 = vmatprep.subr.mxu0 0.0
    %315 = vmatpush1.msra.mxu0 %v110
    %316 = vmatprep.subr.mxu0 0.0
    %317 = vmatpush1.msra.mxu0 %v111
    %318 = vmatprep.subr.mxu0 0.0
    %319 = vmatpush1.msra.mxu0 %v112
    %320 = vmatprep.subr.mxu0 0.0
    %321 = vmatpush1.msra.mxu0 %v113
    %322 = vmatprep.subr.mxu0 0.0
    %323 = vmatpush1.msra.mxu0 %v114
    %324 = vmatprep.subr.mxu0 0.0
    %325 = vmatpush1.msra.mxu0 %v115
    %326 = vmatprep.subr.mxu0 0.0
    %327 = vmatpush1.msra.mxu0 %v116
    %328 = vmatprep.mubr.f32.mxu0 %v20
    %329 = vmatmul.mubr.f32.gmra.mrb[0].mxu0 %v19
    %v330 = vpop.f32.mrb[0].mxu0
    %v331 = vadd.f32 %v261, %v330
    %v332 = vpop.f32.mrb[0].mxu0
    %333 = vdwg.mxu0
    %vm334 = vcmask 162816
    %335 = vst.msk [vmem:[#allocation2] sm:$0xff] %vm334, %v331
    // Predicated region
    $region14: #{tpu_custom_call.1} parent=1 // pred_check
      _
    $region15: #{tpu_custom_call.1} parent=1 // pred_check_branch
      %337 = sbr.rel (0) target = $region17
    $region16: #{tpu_custom_call.1} parent=1 // pred_region
      %s339 = ssub.s32 128, 128
      %340 = vsyncadd [#allocation3], %s339
      %s342 = sshll.u32 [#allocation2], 4
      %s343 = int_to_ptr.vmem [resolvable:$true] %s342
      %345 = dma.vmem_to_hbm [thread:$0]  %s343, 128, %s3, [#allocation3]
    $region17: #{tpu_custom_call.1} parent=1 // pred_fallthru
      _
    // Predicated region
    $region18: #{tpu_custom_call.1} parent=1 // pred_check
      _
    $region19: #{tpu_custom_call.1} parent=1 // pred_check_branch
      %347 = sbr.rel (0) target = $region21
    $region20: #{tpu_custom_call.1} parent=1 // pred_region
      %348 = dma.done [#allocation3], 128
    $region21: #{tpu_custom_call.1} parent=1 // pred_fallthru
      _
    %349 = vsyncpa [#allocation3], 1

</llo_original>
